<compile_context>
chip_gen: v7x
topology: tpu7x:2x2x1
jax: 0.10.0
libtpu: 0.0.40
codegen_flags: <defaults>
</compile_context>

<pallas_src>
import functools

import jax
import jax.numpy as jnp
import numpy as np
from jax import lax
from jax.experimental import pallas as pl
from jax.experimental.pallas import tpu as pltpu


# --------------------------- fused ConvRelu kernel ---------------------------
def make_convrelu_kernel(kernel_size, norm_type, H, W, Cin, Cout):
    k = kernel_size
    p = k // 2
    Wp = W + 2 * p

    def compute(x_ref, w_ref, b_ref, o_ref, xp_ref):
        # x_ref : (1, H, W*Cin)        lane-flattened NHWC image, f32
        # w_ref : (k, Wp*Cin, W*Cout)  block-Toeplitz conv weights, bf16
        # b_ref : (1, W*Cout)          per-channel bias tiled over W, f32
        # o_ref : (1, H, W*Cout)       lane-dense output slab
        # xp_ref: (H+2p, Wp*Cin) f32   halo scratch (None when k == 1)
        if p > 0:
            # SAME-padding halo: zero ONLY the border (interior is fully
            # overwritten each step; re-zeroing every step keeps the scratch
            # valid under "parallel" megacore sharding).
            zrow = jnp.zeros((p, Wp * Cin), jnp.float32)
            zcol = jnp.zeros((H, p * Cin), jnp.float32)
            xp_ref[0:p, :] = zrow
            xp_ref[p + H:p + H + p, :] = zrow
            xp_ref[p:p + H, 0:p * Cin] = zcol
            xp_ref[p:p + H, (p + W) * Cin:Wp * Cin] = zcol
            xp_ref[p:p + H, p * Cin:(p + W) * Cin] = x_ref[0]

        def tap(kh):
            lhs = xp_ref[kh:kh + H, :] if p > 0 else x_ref[0]
            return jnp.dot(lhs.astype(jnp.bfloat16), w_ref[kh],
                           preferred_element_type=jnp.float32)

        acc = tap(0)                                   # (H, W*Cout) f32
        for kh in range(1, k):
            acc = acc + tap(kh)

        y = acc + b_ref[...]                           # bias (no-op under IN)

        if norm_type == 'instance_norm':
            # Per-sample per-channel spatial stats, staying lane-dense.
            # Lane index = w*Cout + c.
            n = float(H * W)
            s1 = jnp.sum(y, axis=0, keepdims=True)      # (1, W*Cout)
            s2 = jnp.sum(y * y, axis=0, keepdims=True)  # (1, W*Cout)
            mu = jnp.sum(s1.reshape(W, Cout), axis=0, keepdims=True) / n
            ex2 = jnp.sum(s2.reshape(W, Cout), axis=0, keepdims=True) / n
            inv = lax.rsqrt(ex2 - mu * mu + 1e-5)       # (1, Cout)
            mu_l = jnp.broadcast_to(mu, (W, Cout)).reshape(1, W * Cout)
            inv_l = jnp.broadcast_to(inv, (W, Cout)).reshape(1, W * Cout)
            y = (y - mu_l) * inv_l

        o_ref[0] = jnp.maximum(y, 0.0).astype(o_ref.dtype)

    if p == 0:
        def kernel(x_ref, w_ref, b_ref, o_ref):
            compute(x_ref, w_ref, b_ref, o_ref, None)
        return kernel

    def kernel(x_ref, w_ref, b_ref, o_ref, xp_ref):
        compute(x_ref, w_ref, b_ref, o_ref, xp_ref)
    return kernel


def conv_relu_forward(x_nchw, wexp, bias_row, *, kernel_size, norm_type):
    """Fused Conv(+BN/IN)+ReLU forward.  x: NCHW f32.  Returns NCHW."""
    B, Cin, H, W = x_nchw.shape
    k = kernel_size
    p = k // 2
    Wp = W + 2 * p
    Cout = bias_row.shape[-1] // W

    # NCHW -> lane-dense (B, H, W*Cin) slab (contiguous reshape of NHWC).
    x = jnp.transpose(x_nchw, (0, 2, 3, 1)).reshape(B, H, W * Cin)

    kernel = make_convrelu_kernel(k, norm_type, H, W, Cin, Cout)
    scratch = [] if p == 0 else [pltpu.VMEM((H + 2 * p, Wp * Cin), jnp.float32)]

    out = pl.pallas_call(
        kernel,
        out_shape=jax.ShapeDtypeStruct((B, H, W * Cout), x_nchw.dtype),
        grid=(B,),
        in_specs=[
            pl.BlockSpec((1, H, W * Cin), lambda b: (b, 0, 0)),
            pl.BlockSpec((k, Wp * Cin, W * Cout), lambda b: (0, 0, 0)),
            pl.BlockSpec((1, W * Cout), lambda b: (0, 0)),
        ],
        out_specs=pl.BlockSpec((1, H, W * Cout), lambda b: (b, 0, 0)),
        scratch_shapes=scratch,
        compiler_params=pltpu.CompilerParams(
            dimension_semantics=("parallel",)),
    )(x, wexp, bias_row)

    # (B, H, W*Cout) -> (B, H, W, Cout) -> NCHW
    return jnp.transpose(out.reshape(B, H, W, Cout), (0, 3, 1, 2))


# ----------------------- host-side weight preparation ------------------------
def prepare_params(w_hwio, scale, bias, *, width, kernel_size):
    """One-time numpy prep:
      * fold the per-channel norm scale into the conv weights,
      * expand to row-wise block-Toeplitz form
          Wexp[kh, v*Cin+ci, w*Cout+co] = w[kh, v-w, ci, co]  (0 elsewhere)
        so the kernel's matmul output is natively (H, W*Cout) lane-dense,
      * tile the bias over W to broadcast along the folded lane axis.
    """
    w = (np.asarray(w_hwio, np.float32)
         * np.asarray(scale, np.float32).reshape(1, 1, 1, -1))
    k = kernel_size
    p = k // 2
    _, _, cin, cout = w.shape
    W = width
    Wp = W + 2 * p
    wexp = np.zeros((k, Wp * cin, W * cout), np.float32)
    for kh in range(k):
        for kw in range(k):
            for wi in range(W):
                v = wi + kw
                wexp[kh, v * cin:(v + 1) * cin,
                     wi * cout:(wi + 1) * cout] = w[kh, kw]
    bias_row = np.tile(np.asarray(bias, np.float32).reshape(-1),
                       W).reshape(1, W * cout)
    return (jnp.asarray(wexp, dtype=jnp.bfloat16),
            jnp.asarray(bias_row, dtype=jnp.float32))


# ------------------------ params (deterministic init) ------------------------
def make_params(key, cin, cout, kernel_size, norm_type):
    k = kernel_size
    keys = iter(jax.random.split(key, 8))
    w = jax.random.normal(next(keys), (k, k, cin, cout), jnp.float32) \
        / np.sqrt(k * k * cin)
    if norm_type == 'batch_norm':
        # inference-mode BN folded to per-channel scale/bias (conv has no bias)
        gamma = 1.0 + 0.1 * jax.random.normal(next(keys), (cout,), jnp.float32)
        beta = 0.1 * jax.random.normal(next(keys), (cout,), jnp.float32)
        mean = 0.1 * jax.random.normal(next(keys), (cout,), jnp.float32)
        var = jax.random.uniform(next(keys), (cout,), jnp.float32,
                                 minval=0.5, maxval=1.5)
        scale = gamma * lax.rsqrt(var + 1e-5)
        bias = beta - mean * scale
    else:
        # no norm or instance norm: conv has a bias, no folded scale
        scale = jnp.ones((cout,), jnp.float32)
        bias = 0.1 * jax.random.normal(next(keys), (cout,), jnp.float32)
    return w, scale, bias


# ----------------------------- pure-JAX reference ----------------------------
def ref_conv_relu(x_nchw, w_hwio, scale, bias, *, kernel_size, norm_type):
    x = jnp.transpose(x_nchw, (0, 2, 3, 1))
    p = kernel_size // 2
    hp = lax.Precision.HIGHEST
    y = lax.conv_general_dilated(
        x, w_hwio, (1, 1), ((p, p), (p, p)),
        dimension_numbers=('NHWC', 'HWIO', 'NHWC'), precision=hp)
    if norm_type == 'batch_norm':
        y = y * scale + bias
    elif norm_type == 'instance_norm':
        y = y + bias
        mu = jnp.mean(y, axis=(1, 2), keepdims=True)
        var = jnp.mean((y - mu) ** 2, axis=(1, 2), keepdims=True)
        y = (y - mu) * lax.rsqrt(var + 1e-5)
    else:
        y = y + bias
    y = jnp.maximum(y, 0.0)
    return jnp.transpose(y, (0, 3, 1, 2))


# ------------------------------------ main ------------------------------------
if __name__ == "__main__":
    B, H, W = 2, 16, 16
    configs = [
        dict(kernel_size=3, norm_type='batch_norm', cin=4, cout=8),
        dict(kernel_size=1, norm_type=None, cin=4, cout=16),
        dict(kernel_size=5, norm_type='instance_norm', cin=4, cout=8),
    ]

    key = jax.random.PRNGKey(0)
    for cfg in configs:
        key, kx, kp = jax.random.split(key, 3)
        x_nchw = jax.random.normal(kx, (B, cfg['cin'], H, W), jnp.float32)
        w, scale, bias = make_params(kp, cfg['cin'], cfg['cout'],
                                     cfg['kernel_size'], cfg['norm_type'])
        wexp, bias_row = prepare_params(w, scale, bias, width=W,
                                        kernel_size=cfg['kernel_size'])

        fwd = jax.jit(functools.partial(conv_relu_forward,
                                        kernel_size=cfg['kernel_size'],
                                        norm_type=cfg['norm_type']))
        out = jax.block_until_ready(fwd(x_nchw, wexp, bias_row))
        ref = jax.block_until_ready(
            ref_conv_relu(x_nchw, w, scale, bias,
                          kernel_size=cfg['kernel_size'],
                          norm_type=cfg['norm_type']))
        # bf16 MXU operands + f32 accumulation vs. HIGHEST-precision reference.
        np.testing.assert_allclose(np.asarray(out), np.asarray(ref),
                                   rtol=2e-2, atol=2e-2)
        assert out.shape == (B, cfg['cout'], H, W)

    print("KERNEL_OK")
</pallas_src>

<mosaic_0001>
module attributes {stable_mosaic.version = 11 : i64} {
  func.func @kernel(%arg0: i32, %arg1: memref<1x16x64xf32, #tpu.memory_space<vmem>>, %arg2: memref<3x72x128xbf16, #tpu.memory_space<vmem>>, %arg3: memref<1x128xf32, #tpu.memory_space<vmem>>, %arg4: memref<1x16x128xf32, #tpu.memory_space<vmem>>, %arg5: memref<18x72xf32, #tpu.memory_space<vmem>>) attributes {dimension_semantics = [#tpu.dimension_semantics<parallel>], iteration_bounds = array<i64: 2>, scalar_prefetch = 0 : i64, scratch_operands = 1 : i64, tpu.core_type = #tpu.core_type<tc>, window_params = [{transform_indices = @transform_0, window_bounds = array<i64: 1, 16, 64>}, {pipeline_mode = #tpu.pipeline_mode<synchronous>, transform_indices = @transform_1, window_bounds = array<i64: 3, 72, 128>}, {pipeline_mode = #tpu.pipeline_mode<synchronous>, transform_indices = @transform_2, window_bounds = array<i64: 1, 128>}, {transform_indices = @transform_3, window_bounds = array<i64: 1, 16, 128>}]} {
    %cst = arith.constant 0.000000e+00 : f32
    %0 = vector.broadcast %cst : f32 to vector<1x72xf32>
    %cst_0 = arith.constant 0.000000e+00 : f32
    %1 = vector.broadcast %cst_0 : f32 to vector<16x4xf32>
    %c0 = arith.constant 0 : index
    %c0_1 = arith.constant 0 : index
    %2 = vector.load %arg5[%c0, %c0_1] : memref<18x72xf32, #tpu.memory_space<vmem>>, vector<1x72xf32>
    tpu.vector_store %arg5[%c0, %c0_1], %0 {strides = array<i32>} : memref<18x72xf32, #tpu.memory_space<vmem>>, vector<1x72xf32>,
    %c17 = arith.constant 17 : index
    %c0_2 = arith.constant 0 : index
    %3 = vector.load %arg5[%c17, %c0_2] : memref<18x72xf32, #tpu.memory_space<vmem>>, vector<1x72xf32>
    tpu.vector_store %arg5[%c17, %c0_2], %0 {strides = array<i32>} : memref<18x72xf32, #tpu.memory_space<vmem>>, vector<1x72xf32>,
    %c1 = arith.constant 1 : index
    %c0_3 = arith.constant 0 : index
    %4 = vector.load %arg5[%c1, %c0_3] : memref<18x72xf32, #tpu.memory_space<vmem>>, vector<16x4xf32>
    tpu.vector_store %arg5[%c1, %c0_3], %1 {strides = array<i32>} : memref<18x72xf32, #tpu.memory_space<vmem>>, vector<16x4xf32>,
    %c1_4 = arith.constant 1 : index
    %c68 = arith.constant 68 : index
    %5 = vector.load %arg5[%c1_4, %c68] : memref<18x72xf32, #tpu.memory_space<vmem>>, vector<16x4xf32>
    tpu.vector_store %arg5[%c1_4, %c68], %1 {strides = array<i32>} : memref<18x72xf32, #tpu.memory_space<vmem>>, vector<16x4xf32>,
    %c0_5 = arith.constant 0 : index
    %c0_6 = arith.constant 0 : index
    %c0_7 = arith.constant 0 : index
    %6 = vector.load %arg1[%c0_5, %c0_6, %c0_7] : memref<1x16x64xf32, #tpu.memory_space<vmem>>, vector<1x16x64xf32>
    %7 = vector.shape_cast %6 : vector<1x16x64xf32> to vector<16x64xf32>
    %c1_8 = arith.constant 1 : index
    %c4 = arith.constant 4 : index
    %8 = vector.load %arg5[%c1_8, %c4] : memref<18x72xf32, #tpu.memory_space<vmem>>, vector<16x64xf32>
    tpu.vector_store %arg5[%c1_8, %c4], %7 {strides = array<i32>} : memref<18x72xf32, #tpu.memory_space<vmem>>, vector<16x64xf32>,
    %c0_9 = arith.constant 0 : index
    %c0_10 = arith.constant 0 : index
    %9 = vector.load %arg5[%c0_9, %c0_10] : memref<18x72xf32, #tpu.memory_space<vmem>>, vector<16x72xf32>
    %10 = arith.truncf %9 : vector<16x72xf32> to vector<16x72xbf16>
    %c0_11 = arith.constant 0 : index
    %c0_12 = arith.constant 0 : index
    %c0_13 = arith.constant 0 : index
    %11 = vector.load %arg2[%c0_11, %c0_12, %c0_13] : memref<3x72x128xbf16, #tpu.memory_space<vmem>>, vector<1x72x128xbf16>
    %12 = vector.shape_cast %11 : vector<1x72x128xbf16> to vector<72x128xbf16>
    %cst_14 = arith.constant dense<0.000000e+00> : vector<16x128xf32>
    %13 = tpu.matmul %10, %12, %cst_14 {dimension_numbers = #tpu.dot_dimension_numbers<[1], [0], [0], [1], [0, 0, 1, 1], [], []>} : vector<16x72xbf16>, vector<72x128xbf16>, vector<16x128xf32> -> vector<16x128xf32>
    %c1_15 = arith.constant 1 : index
    %c0_16 = arith.constant 0 : index
    %14 = vector.load %arg5[%c1_15, %c0_16] : memref<18x72xf32, #tpu.memory_space<vmem>>, vector<16x72xf32>
    %15 = arith.truncf %14 : vector<16x72xf32> to vector<16x72xbf16>
    %c1_17 = arith.constant 1 : index
    %c0_18 = arith.constant 0 : index
    %c0_19 = arith.constant 0 : index
    %16 = vector.load %arg2[%c1_17, %c0_18, %c0_19] : memref<3x72x128xbf16, #tpu.memory_space<vmem>>, vector<1x72x128xbf16>
    %17 = vector.shape_cast %16 : vector<1x72x128xbf16> to vector<72x128xbf16>
    %cst_20 = arith.constant dense<0.000000e+00> : vector<16x128xf32>
    %18 = tpu.matmul %15, %17, %cst_20 {dimension_numbers = #tpu.dot_dimension_numbers<[1], [0], [0], [1], [0, 0, 1, 1], [], []>} : vector<16x72xbf16>, vector<72x128xbf16>, vector<16x128xf32> -> vector<16x128xf32>
    %19 = arith.addf %13, %18 : vector<16x128xf32>
    %c2 = arith.constant 2 : index
    %c0_21 = arith.constant 0 : index
    %20 = vector.load %arg5[%c2, %c0_21] : memref<18x72xf32, #tpu.memory_space<vmem>>, vector<16x72xf32>
    %21 = arith.truncf %20 : vector<16x72xf32> to vector<16x72xbf16>
    %c2_22 = arith.constant 2 : index
    %c0_23 = arith.constant 0 : index
    %c0_24 = arith.constant 0 : index
    %22 = vector.load %arg2[%c2_22, %c0_23, %c0_24] : memref<3x72x128xbf16, #tpu.memory_space<vmem>>, vector<1x72x128xbf16>
    %23 = vector.shape_cast %22 : vector<1x72x128xbf16> to vector<72x128xbf16>
    %cst_25 = arith.constant dense<0.000000e+00> : vector<16x128xf32>
    %24 = tpu.matmul %21, %23, %cst_25 {dimension_numbers = #tpu.dot_dimension_numbers<[1], [0], [0], [1], [0, 0, 1, 1], [], []>} : vector<16x72xbf16>, vector<72x128xbf16>, vector<16x128xf32> -> vector<16x128xf32>
    %25 = arith.addf %19, %24 : vector<16x128xf32>
    %c0_26 = arith.constant 0 : index
    %c0_27 = arith.constant 0 : index
    %26 = vector.load %arg3[%c0_26, %c0_27] : memref<1x128xf32, #tpu.memory_space<vmem>>, vector<1x128xf32>
    %27 = vector.broadcast %26 : vector<1x128xf32> to vector<16x128xf32>
    %28 = arith.addf %25, %27 : vector<16x128xf32>
    %cst_28 = arith.constant 0.000000e+00 : f32
    %29 = vector.broadcast %cst_28 : f32 to vector<16x128xf32>
    %30 = arith.maximumf %28, %29 : vector<16x128xf32>
    %c0_29 = arith.constant 0 : index
    %c0_30 = arith.constant 0 : index
    %c0_31 = arith.constant 0 : index
    %31 = vector.load %arg4[%c0_29, %c0_30, %c0_31] : memref<1x16x128xf32, #tpu.memory_space<vmem>>, vector<1x16x128xf32>
    %32 = vector.shape_cast %31 : vector<1x16x128xf32> to vector<16x128xf32>
    %33 = vector.shape_cast %30 : vector<16x128xf32> to vector<1x16x128xf32>
    tpu.vector_store %arg4[%c0_29, %c0_30, %c0_31], %33 {strides = array<i32>} : memref<1x16x128xf32, #tpu.memory_space<vmem>>, vector<1x16x128xf32>,
    return
  }
  func.func @transform_0(%arg0: i32) -> (i32, i32, i32) {
    %c0_i32 = arith.constant 0 : i32
    %c0_i32_0 = arith.constant 0 : i32
    %c0_i32_1 = arith.constant 0 : i32
    return %arg0, %c0_i32, %c0_i32_0 : i32, i32, i32
  }
  func.func @transform_1(%arg0: i32) -> (i32, i32, i32) {
    %c0_i32 = arith.constant 0 : i32
    %c0_i32_0 = arith.constant 0 : i32
    %c0_i32_1 = arith.constant 0 : i32
    %c0_i32_2 = arith.constant 0 : i32
    return %c0_i32, %c0_i32_0, %c0_i32_1 : i32, i32, i32
  }
  func.func @transform_2(%arg0: i32) -> (i32, i32) {
    %c0_i32 = arith.constant 0 : i32
    %c0_i32_0 = arith.constant 0 : i32
    %c0_i32_1 = arith.constant 0 : i32
    return %c0_i32, %c0_i32_0 : i32, i32
  }
  func.func @transform_3(%arg0: i32) -> (i32, i32, i32) {
    %c0_i32 = arith.constant 0 : i32
    %c0_i32_0 = arith.constant 0 : i32
    %c0_i32_1 = arith.constant 0 : i32
    return %arg0, %c0_i32, %c0_i32_0 : i32, i32, i32
  }
}

</mosaic_0001>

<llo_original>
// kernel: conv_relu_forward.1
$region0: #{conv_relu_forward.1}
  #allocation0 [shape = 'u32[]', space=smem, size = 0x4, offset = 0x4, fixed_abs, tag = 'smem constant byte address 0x4 - core index']
  #allocation1 [shape = 'u32[144,128]{1,0:T(1,128)}', space=vmem, size = 0x12000, scoped, tag = 'internal scratch']
  #allocation2 [shape = 'f32[18,72]{1,0:T(8,128)}', space=vmem, size = 0x3000, scoped, tag = 'scratch operand']
  %s0 = inlined_call_operand.vmem [shape: f32[2,16,64], index: 0, kind: input, shape index: {}]
  %s1 = inlined_call_operand.vmem [shape: bf16[3,72,128], index: 1, kind: input, shape index: {}]
  %s2 = inlined_call_operand.vmem [shape: f32[1,128], index: 2, kind: input, shape index: {}]
  %s3 = inlined_call_operand.vmem [shape: f32[2,16,128], index: 3, kind: output, shape index: {}]
  %s4 = sld [smem:[#allocation0]]
  $region45: #{conv_relu_forward.1} parent=0
    _
  %s6 = ssub.s32 1, %s4
  %s7 = scalar_select 0, %s6, %s4
  loop: start=0, step=1, limit=4
  $region2: #{conv_relu_forward.1} parent=0 // loop_pre_header
    _
  $region3: #{conv_relu_forward.1} parent=0 // loop_header
    %s9 = sphi 0, %s13
    %p10 = scmp.ge.s32.totalorder %s9, 4
    %s19 = sphi 0, %s21
    %s22 = sphi 0, %s19
    %s23 = sphi 0, %s22
    %s39 = sphi 0, %s23
    %s43 = sphi 0, %s43
    %s45 = sphi 0, %s43
    %s46 = sphi 0, %s45
    %s60 = sphi 0, %s46
    %s64 = sphi 0, %s64
    %s66 = sphi 0, %s64
    %s67 = sphi 0, %s66
    %s81 = sphi 0, %s67
    %s87 = sphi 0, %s89
    %s90 = sphi 0, %s87
    %s91 = sphi 0, %s90
    %s107 = sphi 0, %s91
  $region4: #{conv_relu_forward.1} parent=0 // loop_header_branch
    %12 = sbr.rel (%p10) target = $region8
  $region5: #{conv_relu_forward.1} parent=0 // loop_body
    %s14 = ssub.s32 %s9, 1
    %s15 = ssub.s32 %s9, 2
    %s16 = sadd.s32 %s9, 1
    %s17 = ssub.s32 %s9, %s16
    %p18 = scmp.eq.s32.totalorder %s17, 0
    %s20 = sadd.s32 %s19, 1
    %s21 = scalar_select %p18, %s19, %s20
    %p24 = pneg %p18
    %p25 = scmp.eq.s32.totalorder %s9, 1
    %p26 = por %p24, %p25
    %p27 = scmp.ne.s32.totalorder %s19, %s22
    %p28 = scmp.eq.s32.totalorder %s9, 0
    %p29 = por %p27, %p28
    %p30 = scmp.ne.s32.totalorder %s19, %s22
    %p31 = scmp.eq.s32.totalorder %s14, 1
    %p32 = por %p30, %p31
    %p33 = scmp.ne.s32.totalorder %s22, %s23
    %p34 = scmp.eq.s32.totalorder %s14, 0
    %p35 = por %p33, %p34
    %p36 = scmp.ne.s32.totalorder %s22, %s23
    %p37 = scmp.eq.s32.totalorder %s15, 1
    %p38 = por %p36, %p37
    %p40 = scmp.ne.s32.totalorder %s23, %s39
    %p41 = scmp.eq.s32.totalorder %s15, 0
    %p42 = por %p40, %p41
    %s44 = sadd.s32 %s43, 1
    %p47 = scmp.eq.s32.totalorder %s9, 1
    %p48 = scmp.ne.s32.totalorder %s43, %s45
    %p49 = scmp.eq.s32.totalorder %s9, 0
    %p50 = por %p48, %p49
    %p51 = scmp.ne.s32.totalorder %s43, %s45
    %p52 = scmp.eq.s32.totalorder %s14, 1
    %p53 = por %p51, %p52
    %p54 = scmp.ne.s32.totalorder %s45, %s46
    %p55 = scmp.eq.s32.totalorder %s14, 0
    %p56 = por %p54, %p55
    %p57 = scmp.ne.s32.totalorder %s45, %s46
    %p58 = scmp.eq.s32.totalorder %s15, 1
    %p59 = por %p57, %p58
    %p61 = scmp.ne.s32.totalorder %s46, %s60
    %p62 = scmp.eq.s32.totalorder %s15, 0
    %p63 = por %p61, %p62
    %s65 = sadd.s32 %s64, 1
    %p68 = scmp.eq.s32.totalorder %s9, 1
    %p69 = scmp.ne.s32.totalorder %s64, %s66
    %p70 = scmp.eq.s32.totalorder %s9, 0
    %p71 = por %p69, %p70
    %p72 = scmp.ne.s32.totalorder %s64, %s66
    %p73 = scmp.eq.s32.totalorder %s14, 1
    %p74 = por %p72, %p73
    %p75 = scmp.ne.s32.totalorder %s66, %s67
    %p76 = scmp.eq.s32.totalorder %s14, 0
    %p77 = por %p75, %p76
    %p78 = scmp.ne.s32.totalorder %s66, %s67
    %p79 = scmp.eq.s32.totalorder %s15, 1
    %p80 = por %p78, %p79
    %p82 = scmp.ne.s32.totalorder %s67, %s81
    %p83 = scmp.eq.s32.totalorder %s15, 0
    %p84 = por %p82, %p83
    %s85 = ssub.s32 %s9, %s16
    %p86 = scmp.eq.s32.totalorder %s85, 0
    %s88 = sadd.s32 %s87, 1
    %s89 = scalar_select %p86, %s87, %s88
    %p92 = pneg %p86
    %p93 = scmp.eq.s32.totalorder %s9, 1
    %p94 = por %p92, %p93
    %p95 = scmp.ne.s32.totalorder %s87, %s90
    %p96 = scmp.eq.s32.totalorder %s9, 0
    %p97 = por %p95, %p96
    %p98 = scmp.ne.s32.totalorder %s87, %s90
    %p99 = scmp.eq.s32.totalorder %s14, 1
    %p100 = por %p98, %p99
    %p101 = scmp.ne.s32.totalorder %s90, %s91
    %p102 = scmp.eq.s32.totalorder %s14, 0
    %p103 = por %p101, %p102
    %p104 = scmp.ne.s32.totalorder %s90, %s91
    %p105 = scmp.eq.s32.totalorder %s15, 1
    %p106 = por %p104, %p105
    %p108 = scmp.ne.s32.totalorder %s91, %s107
    %p109 = scmp.eq.s32.totalorder %s15, 0
    %p110 = por %p108, %p109
    %p111 = scmp.le.s32.totalorder 1, %s9
    %p112 = scmp.lt.s32.totalorder %s9, 3
    %p113 = pnand %p111, %p112
    %p114 = pneg %p113
    // Predicated region
    $region9: #{conv_relu_forward.1} parent=5 // pred_check
      _
    $region10: #{conv_relu_forward.1} parent=5 // pred_check_branch
      %116 = sbr.rel (%p113) target = $region12
    $region11: #{conv_relu_forward.1} parent=5 // pred_region
      %s117 = ssub.s32 %s9, 1
      // Predicated region
      $region13: #{conv_relu_forward.1} parent=11 // pred_check
        %p118 = pneg %p56
      $region14: #{conv_relu_forward.1} parent=11 // pred_check_branch
        %120 = sbr.rel (%p118) target = $region16
      $region15: #{conv_relu_forward.1} parent=11 // pred_region
        _
      $region16: #{conv_relu_forward.1} parent=11 // pred_fallthru
        _
      // Predicated region
      $region17: #{conv_relu_forward.1} parent=11 // pred_check
        %p121 = pneg %p77
      $region18: #{conv_relu_forward.1} parent=11 // pred_check_branch
        %123 = sbr.rel (%p121) target = $region20
      $region19: #{conv_relu_forward.1} parent=11 // pred_region
        _
      $region20: #{conv_relu_forward.1} parent=11 // pred_fallthru
        _
    $region12: #{conv_relu_forward.1} parent=5 // pred_fallthru
      _
    %p124 = scmp.lt.s32.totalorder %s9, 2
    // Predicated region
    $region21: #{conv_relu_forward.1} parent=5 // pred_check
      %p125 = pneg %p124
    $region22: #{conv_relu_forward.1} parent=5 // pred_check_branch
      %127 = sbr.rel (%p125) target = $region24
    $region23: #{conv_relu_forward.1} parent=5 // pred_region
      // Predicated region
      $region25: #{conv_relu_forward.1} parent=23 // pred_check
        %p128 = pneg %p29
      $region26: #{conv_relu_forward.1} parent=23 // pred_check_branch
        %130 = sbr.rel (%p128) target = $region28
      $region27: #{conv_relu_forward.1} parent=23 // pred_region
        %p131 = scmp.lt.s32.totalorder %s9, 1
        %s132 = scalar_select %p131, %s9, 1
        %s133 = smul.addr %s132, 2
        %s134 = smul.addr %s133, 8
        %s135 = scalar_lea.vmem %s0, %s134
      $region28: #{conv_relu_forward.1} parent=23 // pred_fallthru
        _
    $region24: #{conv_relu_forward.1} parent=5 // pred_fallthru
      _
    %p136 = scmp.le.s32.totalorder 1, %s9
    %p137 = scmp.lt.s32.totalorder %s9, 3
    %p138 = pnand %p136, %p137
    %p139 = pneg %p138
    // Predicated region
    $region29: #{conv_relu_forward.1} parent=5 // pred_check
      _
    $region30: #{conv_relu_forward.1} parent=5 // pred_check_branch
      %141 = sbr.rel (%p138) target = $region32
    $region31: #{conv_relu_forward.1} parent=5 // pred_region
      %s142 = ssub.s32 %s9, 1
      %p143 = scmp.lt.s32.totalorder %s14, 1
      %s144 = scalar_select %p143, %s14, 1
      %s145 = smul.addr %s144, 2
      %s146 = smul.addr %s145, 8
      %s147 = scalar_lea.vmem %s0, %s146
      %p148 = pneg %p35
      %p149 = pneg %p32
      %p150 = pneg %p56
      %p151 = pneg %p53
      %p152 = pneg %p77
      %p153 = pneg %p74
      %p154 = pneg %p103
      %p155 = pneg %p100
      %p156 = scmp.lt.s32.totalorder %s14, 1
      %s157 = scalar_select %p156, %s14, 1
      %s158 = smul.addr %s157, 2
      %s159 = smul.addr %s158, 8
      %s160 = scalar_lea.vmem %s3, %s159
      %p161 = scmp.lt.s32.totalorder %s14, 1
      %s162 = scalar_select %p161, %s14, 1
      %s163 = smul.addr %s162, 2
      %s164 = smul.addr %s163, 8
      %s165 = scalar_lea.vmem %s0, %s164
      %p166 = scmp.lt.s32.totalorder %s14, 1
      %s167 = scalar_select %p166, %s14, 1
      %s168 = smul.addr %s167, 2
      %s169 = smul.addr %s168, 8
      %s170 = scalar_lea.vmem %s3, %s169
      %vm172 = vcmask 581632
      %173 = vst.msk [vmem:[#allocation2] sm:$0x1] %vm172, 0.0
      %174 = vst.msk [vmem:[#allocation2 + $0x11] sm:$0x1] %vm172, 0.0
      %vm175 = vcmask 31744
      %176 = vst.msk [vmem:[#allocation2 + $0x1] sm:$0xff] %vm175, 0.0
      %177 = vst.msk [vmem:[#allocation2 + $0x9] sm:$0xff] %vm175, 0.0
      %vm178 = vcmask 589344
      %179 = vst.msk [vmem:[#allocation2 + $0x1] sm:$0xff] %vm178, 0.0
      %180 = vst.msk [vmem:[#allocation2 + $0x9] sm:$0xff] %vm178, 0.0
      %v181 = vld [vmem:[%s165] sm:$0xff]
      %v182 = vld [vmem:[%s165 + $0x8] sm:$0xff]
      %185 = vrot.lane.b32.xlu0 %v181, 4
      %v186 = vpop.permute.xlu0 %185
      %187 = vrot.lane.b32.xlu0 %v182, 4
      %v188 = vpop.permute.xlu0 %187
      %vm191 = vcmask 556064
      %192 = vst.msk [vmem:[#allocation2 + $0x1] sm:$0xff] %vm191, %v186
      %193 = vst.msk [vmem:[#allocation2 + $0x9] sm:$0xff] %vm191, %v188
      %v194 = vld [vmem:[#allocation2] sm:$0xff]
      %v195 = vld [vmem:[#allocation2 + $0x8] sm:$0xff]
      %v196 = vpack.c.bf16 %v195, %v194
      %v197 = vld [vmem:[%s1] sm:$0xf]
      %v198 = vld [vmem:[%s1 + $0x4] sm:$0xf]
      %v199 = vld [vmem:[%s1 + $0x8] sm:$0xf]
      %v200 = vld [vmem:[%s1 + $0xc] sm:$0xf]
      %v201 = vld [vmem:[%s1 + $0x10] sm:$0xf]
      %v202 = vld [vmem:[%s1 + $0x14] sm:$0xf]
      %v203 = vld [vmem:[%s1 + $0x18] sm:$0xf]
      %v204 = vld [vmem:[%s1 + $0x1c] sm:$0xf]
      %v205 = vld [vmem:[%s1 + $0x20] sm:$0xf]
      %v206 = vld [vmem:[#allocation2 + $0x1] sm:$0xff]
      %v207 = vld [vmem:[#allocation2 + $0x9] sm:$0xff]
      %v208 = vpack.c.bf16 %v207, %v206
      %s209 = scalar_lea.vmem %s1, 36
      %v210 = vld [vmem:[%s209] sm:$0xf]
      %v211 = vld [vmem:[%s209 + $0x4] sm:$0xf]
      %v212 = vld [vmem:[%s209 + $0x8] sm:$0xf]
      %v213 = vld [vmem:[%s209 + $0xc] sm:$0xf]
      %v214 = vld [vmem:[%s209 + $0x10] sm:$0xf]
      %v215 = vld [vmem:[%s209 + $0x14] sm:$0xf]
      %v216 = vld [vmem:[%s209 + $0x18] sm:$0xf]
      %v217 = vld [vmem:[%s209 + $0x1c] sm:$0xf]
      %v218 = vld [vmem:[%s209 + $0x20] sm:$0xf]
      %v228 = vunpack.c.l.b16 %v210
      %v229 = vunpack.c.l.b16 %v211
      %v230 = vunpack.c.l.b16 %v212
      %v231 = vunpack.c.l.b16 %v213
      %v232 = vunpack.c.l.b16 %v214
      %v233 = vunpack.c.l.b16 %v215
      %v234 = vunpack.c.l.b16 %v216
      %v235 = vunpack.c.l.b16 %v217
      %v236 = vunpack.c.l.b16 %v218
      %v237 = vpack.c.b16 %v229, %v228
      %v238 = vpack.c.b16 %v231, %v230
      %v239 = vpack.c.b16 %v233, %v232
      %v240 = vpack.c.b16 %v235, %v234
      %v241 = vpack.c.b16 %v236, %v236
      %vm246 = vcmask 588800
      %v248 = vsel %vm246, %v208, 0
      %vm250 = vcmask 1043456
      %v252 = vsel %vm250, %v241, 0
      %254 = vmatprep.subr.bf16.mxu0 0
      %255 = vmatpush1.bf16.msra.mxu0 %v237
      %256 = vmatprep.subr.bf16.mxu0 0
      %257 = vmatpush1.bf16.msra.mxu0 %v238
      %258 = vmatprep.subr.bf16.mxu0 0
      %259 = vmatpush1.bf16.msra.mxu0 %v239
      %260 = vmatprep.subr.bf16.mxu0 0
      %261 = vmatpush1.bf16.msra.mxu0 %v240
      %262 = vmatprep.subr.bf16.mxu0 0
      %263 = vmatpush1.bf16.msra.mxu0 %v252
      %264 = vmatprep.subr.bf16.mxu0 0
      %265 = vmatpush1.bf16.msra.mxu0 0
      %266 = vmatprep.subr.bf16.mxu0 0
      %267 = vmatpush1.bf16.msra.mxu0 0
      %268 = vmatprep.subr.bf16.mxu0 0
      %269 = vmatpush1.bf16.msra.mxu0 0
      %270 = vmatprep.subr.bf16.mxu0 0
      %271 = vmatpush1.bf16.msra.mxu0 0
      %272 = vmatprep.subr.bf16.mxu0 0
      %273 = vmatpush1.bf16.msra.mxu0 0
      %274 = vmatprep.subr.bf16.mxu0 0
      %275 = vmatpush1.bf16.msra.mxu0 0
      %276 = vmatprep.subr.bf16.mxu0 0
      %277 = vmatpush1.bf16.msra.mxu0 0
      %278 = vmatprep.subr.bf16.mxu0 0
      %279 = vmatpush1.bf16.msra.mxu0 0
      %280 = vmatprep.subr.bf16.mxu0 0
      %281 = vmatpush1.bf16.msra.mxu0 0
      %282 = vmatprep.subr.bf16.mxu0 0
      %283 = vmatpush1.bf16.msra.mxu0 0
      %284 = vmatprep.subr.bf16.mxu0 0
      %285 = vmatpush1.bf16.msra.mxu0 0
      %286 = vmatprep.mubr.bf16.mxu0 0
      %287 = vmatmul.mubr.bf16.gmra.mrb[0].mxu0 %v248
      %v288 = vpop.f32.mrb[0].mxu0
      %v289 = vadd.f32 0.0, %v288
      %v290 = vpop.f32.mrb[0].mxu0
      %v291 = vpop.f32.mrb[0].mxu0
      %v292 = vadd.f32 0.0, %v291
      %v293 = vpop.f32.mrb[0].mxu0
      %294 = vdwg.mxu0
      %v304 = vunpack.c.l.b16 %v197
      %v305 = vunpack.c.l.b16 %v198
      %v306 = vunpack.c.l.b16 %v199
      %v307 = vunpack.c.l.b16 %v200
      %v308 = vunpack.c.l.b16 %v201
      %v309 = vunpack.c.l.b16 %v202
      %v310 = vunpack.c.l.b16 %v203
      %v311 = vunpack.c.l.b16 %v204
      %v312 = vunpack.c.l.b16 %v205
      %v313 = vpack.c.b16 %v305, %v304
      %v314 = vpack.c.b16 %v307, %v306
      %v315 = vpack.c.b16 %v309, %v308
      %v316 = vpack.c.b16 %v311, %v310
      %v317 = vpack.c.b16 %v312, %v312
      %v323 = vsel %vm246, %v196, 0
      %v326 = vsel %vm250, %v317, 0
      %328 = vmatprep.subr.bf16.mxu0 0
      %329 = vmatpush1.bf16.msra.mxu0 %v313
      %330 = vmatprep.subr.bf16.mxu0 0
      %331 = vmatpush1.bf16.msra.mxu0 %v314
      %332 = vmatprep.subr.bf16.mxu0 0
      %333 = vmatpush1.bf16.msra.mxu0 %v315
      %334 = vmatprep.subr.bf16.mxu0 0
      %335 = vmatpush1.bf16.msra.mxu0 %v316
      %336 = vmatprep.subr.bf16.mxu0 0
      %337 = vmatpush1.bf16.msra.mxu0 %v326
      %338 = vmatprep.subr.bf16.mxu0 0
      %339 = vmatpush1.bf16.msra.mxu0 0
      %340 = vmatprep.subr.bf16.mxu0 0
      %341 = vmatpush1.bf16.msra.mxu0 0
      %342 = vmatprep.subr.bf16.mxu0 0
      %343 = vmatpush1.bf16.msra.mxu0 0
      %344 = vmatprep.subr.bf16.mxu0 0
      %345 = vmatpush1.bf16.msra.mxu0 0
      %346 = vmatprep.subr.bf16.mxu0 0
      %347 = vmatpush1.bf16.msra.mxu0 0
      %348 = vmatprep.subr.bf16.mxu0 0
      %349 = vmatpush1.bf16.msra.mxu0 0
      %350 = vmatprep.subr.bf16.mxu0 0
      %351 = vmatpush1.bf16.msra.mxu0 0
      %352 = vmatprep.subr.bf16.mxu0 0
      %353 = vmatpush1.bf16.msra.mxu0 0
      %354 = vmatprep.subr.bf16.mxu0 0
      %355 = vmatpush1.bf16.msra.mxu0 0
      %356 = vmatprep.subr.bf16.mxu0 0
      %357 = vmatpush1.bf16.msra.mxu0 0
      %358 = vmatprep.subr.bf16.mxu0 0
      %359 = vmatpush1.bf16.msra.mxu0 0
      %360 = vmatprep.mubr.bf16.mxu0 0
      %361 = vmatmul.mubr.bf16.gmra.mrb[0].mxu0 %v323
      %v362 = vpop.f32.mrb[0].mxu0
      %v363 = vadd.f32 %v289, %v362
      %v364 = vpop.f32.mrb[0].mxu0
      %v365 = vpop.f32.mrb[0].mxu0
      %v366 = vadd.f32 %v292, %v365
      %v367 = vpop.f32.mrb[0].mxu0
      %368 = vdwg.mxu0
      %v369 = vld [vmem:[#allocation2 + $0x2] sm:$0xff]
      %v370 = vld [vmem:[#allocation2 + $0xa] sm:$0xff]
      %v371 = vpack.c.bf16 %v370, %v369
      %s372 = scalar_lea.vmem %s1, 72
      %v373 = vld [vmem:[%s372] sm:$0xf]
      %v374 = vld [vmem:[%s372 + $0x4] sm:$0xf]
      %v375 = vld [vmem:[%s372 + $0x8] sm:$0xf]
      %v376 = vld [vmem:[%s372 + $0xc] sm:$0xf]
      %v377 = vld [vmem:[%s372 + $0x10] sm:$0xf]
      %v378 = vld [vmem:[%s372 + $0x14] sm:$0xf]
      %v379 = vld [vmem:[%s372 + $0x18] sm:$0xf]
      %v380 = vld [vmem:[%s372 + $0x1c] sm:$0xf]
      %v381 = vld [vmem:[%s372 + $0x20] sm:$0xf]
      %v391 = vunpack.c.l.b16 %v373
      %v392 = vunpack.c.l.b16 %v374
      %v393 = vunpack.c.l.b16 %v375
      %v394 = vunpack.c.l.b16 %v376
      %v395 = vunpack.c.l.b16 %v377
      %v396 = vunpack.c.l.b16 %v378
      %v397 = vunpack.c.l.b16 %v379
      %v398 = vunpack.c.l.b16 %v380
      %v399 = vunpack.c.l.b16 %v381
      %v400 = vpack.c.b16 %v392, %v391
      %v401 = vpack.c.b16 %v394, %v393
      %v402 = vpack.c.b16 %v396, %v395
      %v403 = vpack.c.b16 %v398, %v397
      %v404 = vpack.c.b16 %v399, %v399
      %v410 = vsel %vm246, %v371, 0
      %v413 = vsel %vm250, %v404, 0
      %415 = vmatprep.subr.bf16.mxu0 0
      %416 = vmatpush1.bf16.msra.mxu0 %v400
      %417 = vmatprep.subr.bf16.mxu0 0
      %418 = vmatpush1.bf16.msra.mxu0 %v401
      %419 = vmatprep.subr.bf16.mxu0 0
      %420 = vmatpush1.bf16.msra.mxu0 %v402
      %421 = vmatprep.subr.bf16.mxu0 0
      %422 = vmatpush1.bf16.msra.mxu0 %v403
      %423 = vmatprep.subr.bf16.mxu0 0
      %424 = vmatpush1.bf16.msra.mxu0 %v413
      %425 = vmatprep.subr.bf16.mxu0 0
      %426 = vmatpush1.bf16.msra.mxu0 0
      %427 = vmatprep.subr.bf16.mxu0 0
      %428 = vmatpush1.bf16.msra.mxu0 0
      %429 = vmatprep.subr.bf16.mxu0 0
      %430 = vmatpush1.bf16.msra.mxu0 0
      %431 = vmatprep.subr.bf16.mxu0 0
      %432 = vmatpush1.bf16.msra.mxu0 0
      %433 = vmatprep.subr.bf16.mxu0 0
      %434 = vmatpush1.bf16.msra.mxu0 0
      %435 = vmatprep.subr.bf16.mxu0 0
      %436 = vmatpush1.bf16.msra.mxu0 0
      %437 = vmatprep.subr.bf16.mxu0 0
      %438 = vmatpush1.bf16.msra.mxu0 0
      %439 = vmatprep.subr.bf16.mxu0 0
      %440 = vmatpush1.bf16.msra.mxu0 0
      %441 = vmatprep.subr.bf16.mxu0 0
      %442 = vmatpush1.bf16.msra.mxu0 0
      %443 = vmatprep.subr.bf16.mxu0 0
      %444 = vmatpush1.bf16.msra.mxu0 0
      %445 = vmatprep.subr.bf16.mxu0 0
      %446 = vmatpush1.bf16.msra.mxu0 0
      %447 = vmatprep.mubr.bf16.mxu0 0
      %448 = vmatmul.mubr.bf16.gmra.mrb[0].mxu0 %v410
      %v449 = vpop.f32.mrb[0].mxu0
      %v450 = vadd.f32 0.0, %v449
      %v451 = vpop.f32.mrb[0].mxu0
      %v452 = vpop.f32.mrb[0].mxu0
      %v453 = vadd.f32 0.0, %v452
      %v454 = vpop.f32.mrb[0].mxu0
      %455 = vdwg.mxu0
      %v456 = vadd.f32 %v363, %v450
      %v457 = vadd.f32 %v366, %v453
      %v458 = vld [vmem:[%s2] sm:$0x1]
      %v460 = vlaneseq
      %v461 = vshrl.u32 %v460, 7
      %v462 = vsub.s32 0, %v461
      %v463 = vrot.slane %v458, %v462
      %v465 = vadd.f32 %v456, %v463
      %v466 = vadd.f32 %v457, %v463
      %v467 = vmax.f32 %v465, 0.0
      %v468 = vmax.f32 %v466, 0.0
      %469 = vst [vmem:[%s170] sm:$0xff] %v467
      %470 = vst [vmem:[%s170 + $0x8] sm:$0xff] %v468
      %p471 = scmp.lt.s32.totalorder %s14, 1
      %s472 = scalar_select %p471, %s14, 1
      %s473 = smul.addr %s472, 2
      %s474 = smul.addr %s473, 8
      %s475 = scalar_lea.vmem %s3, %s474
      // Predicated region
      $region33: #{conv_relu_forward.1} parent=31 // pred_check
        %p476 = pneg %p100
      $region34: #{conv_relu_forward.1} parent=31 // pred_check_branch
        %478 = sbr.rel (%p476) target = $region36
      $region35: #{conv_relu_forward.1} parent=31 // pred_region
        _
      $region36: #{conv_relu_forward.1} parent=31 // pred_fallthru
        _
    $region32: #{conv_relu_forward.1} parent=5 // pred_fallthru
      _
    %p479 = scmp.le.s32.totalorder 2, %s9
    // Predicated region
    $region37: #{conv_relu_forward.1} parent=5 // pred_check
      %p480 = pneg %p479
    $region38: #{conv_relu_forward.1} parent=5 // pred_check_branch
      %482 = sbr.rel (%p480) target = $region40
    $region39: #{conv_relu_forward.1} parent=5 // pred_region
      %s483 = ssub.s32 %s9, 2
      // Predicated region
      $region41: #{conv_relu_forward.1} parent=39 // pred_check
        %p484 = pneg %p106
      $region42: #{conv_relu_forward.1} parent=39 // pred_check_branch
        %486 = sbr.rel (%p484) target = $region44
      $region43: #{conv_relu_forward.1} parent=39 // pred_region
        %p487 = scmp.lt.s32.totalorder %s15, 1
        %s488 = scalar_select %p487, %s15, 1
        %s489 = smul.addr %s488, 2
        %s490 = smul.addr %s489, 8
        %s491 = scalar_lea.vmem %s3, %s490
      $region44: #{conv_relu_forward.1} parent=39 // pred_fallthru
        _
    $region40: #{conv_relu_forward.1} parent=5 // pred_fallthru
      _
  $region6: #{conv_relu_forward.1} parent=0 // loop_footer
    %s13 = sadd.s32 1, %s9
  $region7: #{conv_relu_forward.1} parent=0 // loop_footer_branch
    %8 = sbr.rel target = $region3
  $region8: #{conv_relu_forward.1} parent=0 // loop_exit
    _

</llo_original>
